<compile_context>
chip_gen: v5e
topology: v5e:2x2
jax: 0.10.0
libtpu: 0.0.40
codegen_flags: <defaults>
</compile_context>

<pallas_src>
import jax
import jax.numpy as jnp
from jax.experimental import pallas as pl
from jax.experimental.pallas import tpu as pltpu


def _round_up(x, m):
    return (x + m - 1) // m * m


def decoder_kernel(z_ref, w1_ref, b1_ref, w2_ref, b2_ref, w3_ref, b3_ref, o_ref):
    """Fused 3-layer MLP for one batch tile.

    z_ref : (TB, z_dim)   bf16
    w1    : (z_dim, N)    bf16   b1 : (1, N)      f32
    w2    : (N, N)        bf16   b2 : (1, N)      f32
    w3    : (N, x_pad)    bf16   b3 : (1, x_pad)  f32   (x_pad = 128-multiple)
    o_ref : (TB, x_pad)   f32
    """
    slope = 0.2

    # Layer 1: Linear (bf16 operands, f32 MXU accumulation) + LeakyReLU in f32.
    h = jnp.dot(z_ref[...], w1_ref[...], preferred_element_type=jnp.float32)
    h = h + b1_ref[...]
    h = jnp.where(h > 0, h, slope * h)

    # Layer 2.
    h = jnp.dot(h.astype(jnp.bfloat16), w2_ref[...],
                preferred_element_type=jnp.float32)
    h = h + b2_ref[...]
    h = jnp.where(h > 0, h, slope * h)

    # Layer 3 (output, no activation). x_dim already padded lane-dense.
    out = jnp.dot(h.astype(jnp.bfloat16), w3_ref[...],
                  preferred_element_type=jnp.float32)
    out = out + b3_ref[...]
    o_ref[...] = out.astype(o_ref.dtype)


def decoder_fcn_forward(z, params, *, batch_tile=512):
    """Run the decoder MLP with a fused Pallas kernel, tiled over the batch axis.

    `batch_tile` should be large (256-1024); on v7x keep (padded_B / batch_tile)
    >= 4 so both TensorCores get work.
    """
    w1, b1, w2, b2, w3, b3 = params
    B, z_dim = z.shape
    N = w1.shape[1]
    x_dim = w3.shape[1]

    # --- dtype: bf16 matmul operands, f32 biases -----------------------------
    z_bf = z.astype(jnp.bfloat16)
    w1_bf = w1.astype(jnp.bfloat16)
    w2_bf = w2.astype(jnp.bfloat16)
    w3_bf = w3.astype(jnp.bfloat16)
    b1_f = b1.astype(jnp.float32)
    b2_f = b2.astype(jnp.float32)
    b3_f = b3.astype(jnp.float32)

    # --- lane-dense output: pad x_dim to a multiple of 128 (zero columns) ----
    x_pad = _round_up(x_dim, 128)
    if x_pad != x_dim:
        w3_bf = jnp.pad(w3_bf, ((0, 0), (0, x_pad - x_dim)))
        b3_f = jnp.pad(b3_f, ((0, 0), (0, x_pad - x_dim)))

    # --- batch tiling: large tile, padded ragged batch ------------------------
    tile = max(8, min(_round_up(batch_tile, 8), _round_up(B, 8)))
    B_pad = _round_up(B, tile)
    if B_pad != B:
        z_bf = jnp.pad(z_bf, ((0, B_pad - B), (0, 0)))
    grid = (B_pad // tile,)

    cost = pl.CostEstimate(
        flops=2 * B_pad * (z_dim * N + N * N + N * x_pad),
        transcendentals=0,
        bytes_accessed=(
            z_bf.size * 2                                  # bf16 input
            + B_pad * x_pad * 4                            # f32 output
            + (w1_bf.size + w2_bf.size + w3_bf.size) * 2   # bf16 weights
            + (b1_f.size + b2_f.size + b3_f.size) * 4      # f32 biases
        ),
    )

    out = pl.pallas_call(
        decoder_kernel,
        out_shape=jax.ShapeDtypeStruct((B_pad, x_pad), jnp.float32),
        grid=grid,
        in_specs=[
            # activations: one batch tile per grid step
            pl.BlockSpec((tile, z_dim), lambda i: (i, 0)),
            # parameters: full arrays, resident for every grid step
            pl.BlockSpec((z_dim, N), lambda i: (0, 0)),
            pl.BlockSpec((1, N), lambda i: (0, 0)),
            pl.BlockSpec((N, N), lambda i: (0, 0)),
            pl.BlockSpec((1, N), lambda i: (0, 0)),
            pl.BlockSpec((N, x_pad), lambda i: (0, 0)),
            pl.BlockSpec((1, x_pad), lambda i: (0, 0)),
        ],
        out_specs=pl.BlockSpec((tile, x_pad), lambda i: (i, 0)),
        compiler_params=pltpu.CompilerParams(
            dimension_semantics=("parallel",)
        ),
        cost_estimate=cost,
    )(z_bf, w1_bf, b1_f, w2_bf, b2_f, w3_bf, b3_f)

    # Strip batch padding and the zero-padded output columns (layout plumbing).
    return out[:B, :x_dim]


def init_params(key, z_dim, N, x_dim):
    """Deterministic synthetic init (xavier-normal-like weights, zero bias)."""
    k1, k2, k3 = jax.random.split(key, 3)

    def xavier_normal(k, fan_in, fan_out):
        std = jnp.sqrt(2.0 / (fan_in + fan_out))
        return jax.random.normal(k, (fan_in, fan_out), jnp.float32) * std

    w1 = xavier_normal(k1, z_dim, N)
    b1 = jnp.zeros((1, N), jnp.float32)
    w2 = xavier_normal(k2, N, N)
    b2 = jnp.zeros((1, N), jnp.float32)
    w3 = xavier_normal(k3, N, x_dim)
    b3 = jnp.zeros((1, x_dim), jnp.float32)
    return (w1, b1, w2, b2, w3, b3)


def decoder_fcn_ref(z, params):
    """Pure-JAX f32 reference for correctness check."""
    w1, b1, w2, b2, w3, b3 = params
    h = z @ w1 + b1
    h = jnp.where(h > 0, h, 0.2 * h)
    h = h @ w2 + b2
    h = jnp.where(h > 0, h, 0.2 * h)
    return h @ w3 + b3


if __name__ == "__main__":
    # Small shapes consistent with the module's (z_dim -> N -> N -> x_dim) MLP.
    B, z_dim, N, x_dim = 16, 32, 128, 64

    key = jax.random.PRNGKey(0)
    k_z, k_p = jax.random.split(key)
    z = jax.random.normal(k_z, (B, z_dim), jnp.float32)
    params = init_params(k_p, z_dim, N, x_dim)

    # TODO(synk): Dropout(0.25) is identity here (inference semantics); training-mode
    # dropout would need pltpu.prng_seed/prng_random_bits masking + 1/(1-p) scaling.
    out = decoder_fcn_forward(z, params)
    out = jax.block_until_ready(out)

    ref = decoder_fcn_ref(z, params)
    assert out.shape == (B, x_dim)
    # bf16 matmul operands with f32 accumulation -> loosened tolerance vs f32 ref.
    assert jnp.allclose(out, ref, atol=3e-2, rtol=3e-2), (
        float(jnp.max(jnp.abs(out - ref)))
    )

    print("KERNEL_OK")
</pallas_src>

<mosaic_0001>
module attributes {stable_mosaic.version = 11 : i64} {
  func.func @decoder_kernel(%arg0: i32, %arg1: memref<16x32xbf16, #tpu.memory_space<vmem>>, %arg2: memref<32x128xbf16, #tpu.memory_space<vmem>>, %arg3: memref<1x128xf32, #tpu.memory_space<vmem>>, %arg4: memref<128x128xbf16, #tpu.memory_space<vmem>>, %arg5: memref<1x128xf32, #tpu.memory_space<vmem>>, %arg6: memref<128x128xbf16, #tpu.memory_space<vmem>>, %arg7: memref<1x128xf32, #tpu.memory_space<vmem>>, %arg8: memref<16x128xf32, #tpu.memory_space<vmem>>) attributes {dimension_semantics = [#tpu.dimension_semantics<parallel>], iteration_bounds = array<i64: 1>, scalar_prefetch = 0 : i64, scratch_operands = 0 : i64, tpu.core_type = #tpu.core_type<tc>, window_params = [{transform_indices = @transform_0, window_bounds = array<i64: 16, 32>}, {pipeline_mode = #tpu.pipeline_mode<synchronous>, transform_indices = @transform_1, window_bounds = array<i64: 32, 128>}, {pipeline_mode = #tpu.pipeline_mode<synchronous>, transform_indices = @transform_2, window_bounds = array<i64: 1, 128>}, {pipeline_mode = #tpu.pipeline_mode<synchronous>, transform_indices = @transform_3, window_bounds = array<i64: 128, 128>}, {pipeline_mode = #tpu.pipeline_mode<synchronous>, transform_indices = @transform_4, window_bounds = array<i64: 1, 128>}, {pipeline_mode = #tpu.pipeline_mode<synchronous>, transform_indices = @transform_5, window_bounds = array<i64: 128, 128>}, {pipeline_mode = #tpu.pipeline_mode<synchronous>, transform_indices = @transform_6, window_bounds = array<i64: 1, 128>}, {transform_indices = @transform_7, window_bounds = array<i64: 16, 128>}]} {
    %c0 = arith.constant 0 : index
    %c0_0 = arith.constant 0 : index
    %0 = vector.load %arg1[%c0, %c0_0] : memref<16x32xbf16, #tpu.memory_space<vmem>>, vector<16x32xbf16>
    %c0_1 = arith.constant 0 : index
    %c0_2 = arith.constant 0 : index
    %1 = vector.load %arg2[%c0_1, %c0_2] : memref<32x128xbf16, #tpu.memory_space<vmem>>, vector<32x128xbf16>
    %cst = arith.constant dense<0.000000e+00> : vector<16x128xf32>
    %2 = tpu.matmul %0, %1, %cst {dimension_numbers = #tpu.dot_dimension_numbers<[1], [0], [0], [1], [0, 0, 1, 1], [], []>} : vector<16x32xbf16>, vector<32x128xbf16>, vector<16x128xf32> -> vector<16x128xf32>
    %c0_3 = arith.constant 0 : index
    %c0_4 = arith.constant 0 : index
    %3 = vector.load %arg3[%c0_3, %c0_4] : memref<1x128xf32, #tpu.memory_space<vmem>>, vector<1x128xf32>
    %4 = vector.broadcast %3 : vector<1x128xf32> to vector<16x128xf32>
    %5 = arith.addf %2, %4 : vector<16x128xf32>
    %cst_5 = arith.constant 0.000000e+00 : f32
    %6 = vector.broadcast %cst_5 : f32 to vector<16x128xf32>
    %7 = arith.cmpf ogt, %5, %6 : vector<16x128xf32>
    %cst_6 = arith.constant 2.000000e-01 : f32
    %8 = vector.broadcast %cst_6 : f32 to vector<16x128xf32>
    %9 = arith.mulf %8, %5 : vector<16x128xf32>
    %10 = arith.select %7, %5, %9 : vector<16x128xi1>, vector<16x128xf32>
    %11 = arith.truncf %10 : vector<16x128xf32> to vector<16x128xbf16>
    %c0_7 = arith.constant 0 : index
    %c0_8 = arith.constant 0 : index
    %12 = vector.load %arg4[%c0_7, %c0_8] : memref<128x128xbf16, #tpu.memory_space<vmem>>, vector<128x128xbf16>
    %cst_9 = arith.constant dense<0.000000e+00> : vector<16x128xf32>
    %13 = tpu.matmul %11, %12, %cst_9 {dimension_numbers = #tpu.dot_dimension_numbers<[1], [0], [0], [1], [0, 0, 1, 1], [], []>} : vector<16x128xbf16>, vector<128x128xbf16>, vector<16x128xf32> -> vector<16x128xf32>
    %c0_10 = arith.constant 0 : index
    %c0_11 = arith.constant 0 : index
    %14 = vector.load %arg5[%c0_10, %c0_11] : memref<1x128xf32, #tpu.memory_space<vmem>>, vector<1x128xf32>
    %15 = vector.broadcast %14 : vector<1x128xf32> to vector<16x128xf32>
    %16 = arith.addf %13, %15 : vector<16x128xf32>
    %cst_12 = arith.constant 0.000000e+00 : f32
    %17 = vector.broadcast %cst_12 : f32 to vector<16x128xf32>
    %18 = arith.cmpf ogt, %16, %17 : vector<16x128xf32>
    %cst_13 = arith.constant 2.000000e-01 : f32
    %19 = vector.broadcast %cst_13 : f32 to vector<16x128xf32>
    %20 = arith.mulf %19, %16 : vector<16x128xf32>
    %21 = arith.select %18, %16, %20 : vector<16x128xi1>, vector<16x128xf32>
    %22 = arith.truncf %21 : vector<16x128xf32> to vector<16x128xbf16>
    %c0_14 = arith.constant 0 : index
    %c0_15 = arith.constant 0 : index
    %23 = vector.load %arg6[%c0_14, %c0_15] : memref<128x128xbf16, #tpu.memory_space<vmem>>, vector<128x128xbf16>
    %cst_16 = arith.constant dense<0.000000e+00> : vector<16x128xf32>
    %24 = tpu.matmul %22, %23, %cst_16 {dimension_numbers = #tpu.dot_dimension_numbers<[1], [0], [0], [1], [0, 0, 1, 1], [], []>} : vector<16x128xbf16>, vector<128x128xbf16>, vector<16x128xf32> -> vector<16x128xf32>
    %c0_17 = arith.constant 0 : index
    %c0_18 = arith.constant 0 : index
    %25 = vector.load %arg7[%c0_17, %c0_18] : memref<1x128xf32, #tpu.memory_space<vmem>>, vector<1x128xf32>
    %26 = vector.broadcast %25 : vector<1x128xf32> to vector<16x128xf32>
    %27 = arith.addf %24, %26 : vector<16x128xf32>
    %c0_19 = arith.constant 0 : index
    %c0_20 = arith.constant 0 : index
    %28 = vector.load %arg8[%c0_19, %c0_20] : memref<16x128xf32, #tpu.memory_space<vmem>>, vector<16x128xf32>
    tpu.vector_store %arg8[%c0_19, %c0_20], %27 {strides = array<i32>} : memref<16x128xf32, #tpu.memory_space<vmem>>, vector<16x128xf32>,
    return
  }
  func.func @transform_0(%arg0: i32) -> (i32, i32) {
    %c0_i32 = arith.constant 0 : i32
    %c0_i32_0 = arith.constant 0 : i32
    return %arg0, %c0_i32 : i32, i32
  }
  func.func @transform_1(%arg0: i32) -> (i32, i32) {
    %c0_i32 = arith.constant 0 : i32
    %c0_i32_0 = arith.constant 0 : i32
    %c0_i32_1 = arith.constant 0 : i32
    return %c0_i32, %c0_i32_0 : i32, i32
  }
  func.func @transform_2(%arg0: i32) -> (i32, i32) {
    %c0_i32 = arith.constant 0 : i32
    %c0_i32_0 = arith.constant 0 : i32
    %c0_i32_1 = arith.constant 0 : i32
    return %c0_i32, %c0_i32_0 : i32, i32
  }
  func.func @transform_3(%arg0: i32) -> (i32, i32) {
    %c0_i32 = arith.constant 0 : i32
    %c0_i32_0 = arith.constant 0 : i32
    %c0_i32_1 = arith.constant 0 : i32
    return %c0_i32, %c0_i32_0 : i32, i32
  }
  func.func @transform_4(%arg0: i32) -> (i32, i32) {
    %c0_i32 = arith.constant 0 : i32
    %c0_i32_0 = arith.constant 0 : i32
    %c0_i32_1 = arith.constant 0 : i32
    return %c0_i32, %c0_i32_0 : i32, i32
  }
  func.func @transform_5(%arg0: i32) -> (i32, i32) {
    %c0_i32 = arith.constant 0 : i32
    %c0_i32_0 = arith.constant 0 : i32
    %c0_i32_1 = arith.constant 0 : i32
    return %c0_i32, %c0_i32_0 : i32, i32
  }
  func.func @transform_6(%arg0: i32) -> (i32, i32) {
    %c0_i32 = arith.constant 0 : i32
    %c0_i32_0 = arith.constant 0 : i32
    %c0_i32_1 = arith.constant 0 : i32
    return %c0_i32, %c0_i32_0 : i32, i32
  }
  func.func @transform_7(%arg0: i32) -> (i32, i32) {
    %c0_i32 = arith.constant 0 : i32
    %c0_i32_0 = arith.constant 0 : i32
    return %arg0, %c0_i32 : i32, i32
  }
}

</mosaic_0001>

<llo_original>
// kernel: tpu_custom_call.1
$region0: #{tpu_custom_call.1}
  #allocation0 [shape = 'u32[]', space=smem, size = 0x4, offset = 0x4, fixed_abs, tag = 'smem constant byte address 0x4 - core index']
  #allocation1 [shape = 'u32[72,128]{1,0:T(1,128)}', space=vmem, size = 0x9000, scoped, tag = 'internal scratch']
  %s0 = inlined_call_operand.hbm [shape: bf16[16,32], index: 0, kind: input, shape index: {}]
  %s1 = inlined_call_operand.hbm [shape: bf16[32,128], index: 1, kind: input, shape index: {}]
  %s2 = inlined_call_operand.vmem [shape: f32[1,128], index: 2, kind: input, shape index: {}]
  %s3 = inlined_call_operand.hbm [shape: bf16[128,128], index: 3, kind: input, shape index: {}]
  %s4 = inlined_call_operand.vmem [shape: f32[1,128], index: 4, kind: input, shape index: {}]
  %s5 = inlined_call_operand.hbm [shape: bf16[128,128], index: 5, kind: input, shape index: {}]
  %s6 = inlined_call_operand.vmem [shape: f32[1,128], index: 6, kind: input, shape index: {}]
  %s7 = inlined_call_operand.hbm [shape: f32[16,128], index: 7, kind: output, shape index: {}]
  %s8 = sld [smem:[#allocation0]]
  $region54: #{tpu_custom_call.1} parent=0
    _
  %s10 = ssub.s32 1, %s8
  %s11 = scalar_select 0, %s10, %s8
  $region1: #{tpu_custom_call.1} parent=0
    #allocation2 [shape = 'u8[4096]{0}', space=vmem, size = 0x1000, scoped, tag = 'input window, operand 0, single buffered']
    #allocation3 [shape = 's32[1]{0}', space=sflag, size = 0x4, scoped, tag = 'scoped memory for tpu_custom_call.1']
    #allocation4 [shape = 's32[1]{0}', space=sflag, size = 0x4, scoped, tag = 'scoped memory for tpu_custom_call.1']
    #allocation5 [shape = 'u8[8192]{0}', space=vmem, size = 0x2000, scoped, tag = 'input window, operand 1, single buffered']
    #allocation6 [shape = 's32[1]{0}', space=sflag, size = 0x4, scoped, tag = 'scoped memory for tpu_custom_call.1']
    #allocation7 [shape = 'u8[32768]{0}', space=vmem, size = 0x8000, scoped, tag = 'input window, operand 3, single buffered']
    #allocation8 [shape = 'u8[32768]{0}', space=vmem, size = 0x8000, scoped, tag = 'input window, operand 5, single buffered']
    #allocation9 [shape = 's32[1]{0}', space=sflag, size = 0x4, scoped, tag = 'scoped memory for tpu_custom_call.1']
    #allocation10 [shape = 'u8[8192]{0}', space=vmem, size = 0x2000, scoped, tag = 'output window, operand 0, single buffered']
    %12 = vsyncpa [#allocation3], 0
    %13 = vsyncpa [#allocation6], 0
    %14 = vsyncpa [#allocation9], 0
    %15 = vsyncpa [#allocation4], 0
    // Predicated region
    $region2: #{tpu_custom_call.1} parent=1 // pred_check
      _
    $region3: #{tpu_custom_call.1} parent=1 // pred_check_branch
      %17 = sbr.rel (0) target = $region5
    $region4: #{tpu_custom_call.1} parent=1 // pred_region
      %19 = vsyncadd [#allocation3], 0
      %s20 = sshll.u32 %s0, 4
      %s21 = int_to_ptr.hbm [resolvable:$true] %s20
      %s22 = sshll.u32 [#allocation2], 4
      %s23 = int_to_ptr.vmem [resolvable:$true] %s22
      %28 = dma.hbm_to_vmem [thread:$0]  %s21, 128, %s23, [#allocation3], 64, 64, 4
    $region5: #{tpu_custom_call.1} parent=1 // pred_fallthru
      _
    // Predicated region
    $region6: #{tpu_custom_call.1} parent=1 // pred_check
      _
    $region7: #{tpu_custom_call.1} parent=1 // pred_check_branch
      %30 = sbr.rel (0) target = $region9
    $region8: #{tpu_custom_call.1} parent=1 // pred_region
      %32 = vsyncadd [#allocation6], 0
      %s33 = sshll.u32 %s1, 4
      %s34 = int_to_ptr.hbm [resolvable:$true] %s33
      %s35 = sshll.u32 [#allocation5], 4
      %s36 = int_to_ptr.vmem [resolvable:$true] %s35
      %41 = dma.hbm_to_vmem [thread:$0]  %s34, 256, %s36, [#allocation6], 64, 64, 4
    $region9: #{tpu_custom_call.1} parent=1 // pred_fallthru
      _
    // Predicated region
    $region10: #{tpu_custom_call.1} parent=1 // pred_check
      _
    $region11: #{tpu_custom_call.1} parent=1 // pred_check_branch
      %43 = sbr.rel (0) target = $region13
    $region12: #{tpu_custom_call.1} parent=1 // pred_region
      _
    $region13: #{tpu_custom_call.1} parent=1 // pred_fallthru
      _
    // Predicated region
    $region14: #{tpu_custom_call.1} parent=1 // pred_check
      _
    $region15: #{tpu_custom_call.1} parent=1 // pred_check_branch
      %45 = sbr.rel (0) target = $region17
    $region16: #{tpu_custom_call.1} parent=1 // pred_region
      %47 = vsyncadd [#allocation6], 0
      %s48 = sshll.u32 %s3, 4
      %s49 = int_to_ptr.hbm [resolvable:$true] %s48
      %s50 = sshll.u32 [#allocation7], 4
      %s51 = int_to_ptr.vmem [resolvable:$true] %s50
      %56 = dma.hbm_to_vmem [thread:$0]  %s49, 1024, %s51, [#allocation6], 64, 64, 4
    $region17: #{tpu_custom_call.1} parent=1 // pred_fallthru
      _
    // Predicated region
    $region18: #{tpu_custom_call.1} parent=1 // pred_check
      _
    $region19: #{tpu_custom_call.1} parent=1 // pred_check_branch
      %58 = sbr.rel (0) target = $region21
    $region20: #{tpu_custom_call.1} parent=1 // pred_region
      _
    $region21: #{tpu_custom_call.1} parent=1 // pred_fallthru
      _
    // Predicated region
    $region22: #{tpu_custom_call.1} parent=1 // pred_check
      _
    $region23: #{tpu_custom_call.1} parent=1 // pred_check_branch
      %60 = sbr.rel (0) target = $region25
    $region24: #{tpu_custom_call.1} parent=1 // pred_region
      %62 = vsyncadd [#allocation9], 0
      %s63 = sshll.u32 %s5, 4
      %s64 = int_to_ptr.hbm [resolvable:$true] %s63
      %s65 = sshll.u32 [#allocation8], 4
      %s66 = int_to_ptr.vmem [resolvable:$true] %s65
      %71 = dma.hbm_to_vmem [thread:$0]  %s64, 1024, %s66, [#allocation9], 64, 64, 4
    $region25: #{tpu_custom_call.1} parent=1 // pred_fallthru
      _
    // Predicated region
    $region26: #{tpu_custom_call.1} parent=1 // pred_check
      _
    $region27: #{tpu_custom_call.1} parent=1 // pred_check_branch
      %73 = sbr.rel (0) target = $region29
    $region28: #{tpu_custom_call.1} parent=1 // pred_region
      _
    $region29: #{tpu_custom_call.1} parent=1 // pred_fallthru
      _
    // Predicated region
    $region30: #{tpu_custom_call.1} parent=1 // pred_check
      _
    $region31: #{tpu_custom_call.1} parent=1 // pred_check_branch
      %75 = sbr.rel (0) target = $region33
    $region32: #{tpu_custom_call.1} parent=1 // pred_region
      %77 = dma.done [#allocation3], 128
    $region33: #{tpu_custom_call.1} parent=1 // pred_fallthru
      _
    // Predicated region
    $region34: #{tpu_custom_call.1} parent=1 // pred_check
      _
    $region35: #{tpu_custom_call.1} parent=1 // pred_check_branch
      %79 = sbr.rel (0) target = $region37
    $region36: #{tpu_custom_call.1} parent=1 // pred_region
      %81 = dma.done [#allocation6], 256
    $region37: #{tpu_custom_call.1} parent=1 // pred_fallthru
      _
    // Predicated region
    $region38: #{tpu_custom_call.1} parent=1 // pred_check
      _
    $region39: #{tpu_custom_call.1} parent=1 // pred_check_branch
      %83 = sbr.rel (0) target = $region41
    $region40: #{tpu_custom_call.1} parent=1 // pred_region
      %85 = dma.done [#allocation6], 1024
    $region41: #{tpu_custom_call.1} parent=1 // pred_fallthru
      _
    // Predicated region
    $region42: #{tpu_custom_call.1} parent=1 // pred_check
      _
    $region43: #{tpu_custom_call.1} parent=1 // pred_check_branch
      %87 = sbr.rel (0) target = $region45
    $region44: #{tpu_custom_call.1} parent=1 // pred_region
      %89 = dma.done [#allocation9], 1024
    $region45: #{tpu_custom_call.1} parent=1 // pred_fallthru
      _
    %v91 = vld [vmem:[#allocation2] sm:$0xf]
    %v92 = vld [vmem:[#allocation2 + $0x4] sm:$0xf]
    %v93 = vld [vmem:[#allocation5] sm:$0xf]
    %v94 = vld [vmem:[#allocation5 + $0x4] sm:$0xf]
    %v95 = vld [vmem:[#allocation5 + $0x8] sm:$0xf]
    %v96 = vld [vmem:[#allocation5 + $0xc] sm:$0xf]
    %v97 = vld [vmem:[%s2] sm:$0x1]
    %v99 = vperm.slane %v97, 0
    %v103 = vunpack.c.l.b16 %v91
    %v104 = vunpack.c.l.b16 %v92
    %v105 = vpack.c.b16 %v104, %v103
    %v110 = vunpack.c.l.b16 %v93
    %v111 = vunpack.c.l.b16 %v94
    %v112 = vunpack.c.l.b16 %v95
    %v113 = vunpack.c.l.b16 %v96
    %v114 = vpack.c.b16 %v111, %v110
    %v115 = vpack.c.b16 %v113, %v112
    %vm118 = vcmask 261120
    %v120 = vsel %vm118, %v105, 0
    %122 = vmatpush.bf16.msra.mxu0 0
    %123 = vmatpush.bf16.msra.mxu0 0
    %124 = vmatpush.bf16.msra.mxu0 0
    %125 = vmatpush.bf16.msra.mxu0 0
    %126 = vmatpush.bf16.msra.mxu0 0
    %127 = vmatpush.bf16.msra.mxu0 0
    %128 = vmatpush.bf16.msra.mxu0 %v115
    %129 = vmatpush.bf16.msra.mxu0 %v114
    %130 = vmatmul.bf16.gmra.mxu0 %v120
    %v131 = vpop.f32.mrf.mxu0
    %v132 = vadd.f32 %v99, %v131
    %v133 = vpop.f32.mrf.mxu0
    %v134 = vadd.f32 %v99, %v133
    %135 = vdwg.mxu0
    %vm136 = vcmp.gt.f32.partialorder %v132, 0.0
    %vm137 = vcmp.gt.f32.partialorder %v134, 0.0
    %v138 = vmul.f32 %v132, 0.2
    %v139 = vmul.f32 %v134, 0.2
    %v140 = vsel %vm136, %v132, %v138
    %v141 = vsel %vm137, %v134, %v139
    %v142 = vpack.c.bf16 %v141, %v140
    %v143 = vld [vmem:[#allocation7] sm:$0xf]
    %v144 = vld [vmem:[#allocation7 + $0x4] sm:$0xf]
    %v145 = vld [vmem:[#allocation7 + $0x8] sm:$0xf]
    %v146 = vld [vmem:[#allocation7 + $0xc] sm:$0xf]
    %v147 = vld [vmem:[#allocation7 + $0x10] sm:$0xf]
    %v148 = vld [vmem:[#allocation7 + $0x14] sm:$0xf]
    %v149 = vld [vmem:[#allocation7 + $0x18] sm:$0xf]
    %v150 = vld [vmem:[#allocation7 + $0x1c] sm:$0xf]
    %v151 = vld [vmem:[#allocation7 + $0x20] sm:$0xf]
    %v152 = vld [vmem:[#allocation7 + $0x24] sm:$0xf]
    %v153 = vld [vmem:[#allocation7 + $0x28] sm:$0xf]
    %v154 = vld [vmem:[#allocation7 + $0x2c] sm:$0xf]
    %v155 = vld [vmem:[#allocation7 + $0x30] sm:$0xf]
    %v156 = vld [vmem:[#allocation7 + $0x34] sm:$0xf]
    %v157 = vld [vmem:[#allocation7 + $0x38] sm:$0xf]
    %v158 = vld [vmem:[#allocation7 + $0x3c] sm:$0xf]
    %v159 = vld [vmem:[%s4] sm:$0x1]
    %v161 = vperm.slane %v159, 0
    %v179 = vunpack.c.l.b16 %v143
    %v180 = vunpack.c.l.b16 %v144
    %v181 = vunpack.c.l.b16 %v145
    %v182 = vunpack.c.l.b16 %v146
    %v183 = vunpack.c.l.b16 %v147
    %v184 = vunpack.c.l.b16 %v148
    %v185 = vunpack.c.l.b16 %v149
    %v186 = vunpack.c.l.b16 %v150
    %v187 = vunpack.c.l.b16 %v151
    %v188 = vunpack.c.l.b16 %v152
    %v189 = vunpack.c.l.b16 %v153
    %v190 = vunpack.c.l.b16 %v154
    %v191 = vunpack.c.l.b16 %v155
    %v192 = vunpack.c.l.b16 %v156
    %v193 = vunpack.c.l.b16 %v157
    %v194 = vunpack.c.l.b16 %v158
    %v195 = vpack.c.b16 %v180, %v179
    %v196 = vpack.c.b16 %v182, %v181
    %v197 = vpack.c.b16 %v184, %v183
    %v198 = vpack.c.b16 %v186, %v185
    %v199 = vpack.c.b16 %v188, %v187
    %v200 = vpack.c.b16 %v190, %v189
    %v201 = vpack.c.b16 %v192, %v191
    %v202 = vpack.c.b16 %v194, %v193
    %211 = vmatpush.bf16.msra.mxu0 %v202
    %212 = vmatpush.bf16.msra.mxu0 %v201
    %213 = vmatpush.bf16.msra.mxu0 %v200
    %214 = vmatpush.bf16.msra.mxu0 %v199
    %215 = vmatpush.bf16.msra.mxu0 %v198
    %216 = vmatpush.bf16.msra.mxu0 %v197
    %217 = vmatpush.bf16.msra.mxu0 %v196
    %218 = vmatpush.bf16.msra.mxu0 %v195
    %219 = vmatmul.bf16.gmra.mxu0 %v142
    %v220 = vpop.f32.mrf.mxu0
    %v221 = vadd.f32 %v161, %v220
    %v222 = vpop.f32.mrf.mxu0
    %v223 = vadd.f32 %v161, %v222
    %224 = vdwg.mxu0
    %vm225 = vcmp.gt.f32.partialorder %v221, 0.0
    %vm226 = vcmp.gt.f32.partialorder %v223, 0.0
    %v227 = vmul.f32 %v221, 0.2
    %v228 = vmul.f32 %v223, 0.2
    %v229 = vsel %vm225, %v221, %v227
    %v230 = vsel %vm226, %v223, %v228
    %v231 = vpack.c.bf16 %v230, %v229
    %v232 = vld [vmem:[#allocation8] sm:$0xf]
    %v233 = vld [vmem:[#allocation8 + $0x4] sm:$0xf]
    %v234 = vld [vmem:[#allocation8 + $0x8] sm:$0xf]
    %v235 = vld [vmem:[#allocation8 + $0xc] sm:$0xf]
    %v236 = vld [vmem:[#allocation8 + $0x10] sm:$0xf]
    %v237 = vld [vmem:[#allocation8 + $0x14] sm:$0xf]
    %v238 = vld [vmem:[#allocation8 + $0x18] sm:$0xf]
    %v239 = vld [vmem:[#allocation8 + $0x1c] sm:$0xf]
    %v240 = vld [vmem:[#allocation8 + $0x20] sm:$0xf]
    %v241 = vld [vmem:[#allocation8 + $0x24] sm:$0xf]
    %v242 = vld [vmem:[#allocation8 + $0x28] sm:$0xf]
    %v243 = vld [vmem:[#allocation8 + $0x2c] sm:$0xf]
    %v244 = vld [vmem:[#allocation8 + $0x30] sm:$0xf]
    %v245 = vld [vmem:[#allocation8 + $0x34] sm:$0xf]
    %v246 = vld [vmem:[#allocation8 + $0x38] sm:$0xf]
    %v247 = vld [vmem:[#allocation8 + $0x3c] sm:$0xf]
    %v248 = vld [vmem:[%s6] sm:$0x1]
    %v250 = vperm.slane %v248, 0
    %v268 = vunpack.c.l.b16 %v232
    %v269 = vunpack.c.l.b16 %v233
    %v270 = vunpack.c.l.b16 %v234
    %v271 = vunpack.c.l.b16 %v235
    %v272 = vunpack.c.l.b16 %v236
    %v273 = vunpack.c.l.b16 %v237
    %v274 = vunpack.c.l.b16 %v238
    %v275 = vunpack.c.l.b16 %v239
    %v276 = vunpack.c.l.b16 %v240
    %v277 = vunpack.c.l.b16 %v241
    %v278 = vunpack.c.l.b16 %v242
    %v279 = vunpack.c.l.b16 %v243
    %v280 = vunpack.c.l.b16 %v244
    %v281 = vunpack.c.l.b16 %v245
    %v282 = vunpack.c.l.b16 %v246
    %v283 = vunpack.c.l.b16 %v247
    %v284 = vpack.c.b16 %v269, %v268
    %v285 = vpack.c.b16 %v271, %v270
    %v286 = vpack.c.b16 %v273, %v272
    %v287 = vpack.c.b16 %v275, %v274
    %v288 = vpack.c.b16 %v277, %v276
    %v289 = vpack.c.b16 %v279, %v278
    %v290 = vpack.c.b16 %v281, %v280
    %v291 = vpack.c.b16 %v283, %v282
    %300 = vmatpush.bf16.msra.mxu0 %v291
    %301 = vmatpush.bf16.msra.mxu0 %v290
    %302 = vmatpush.bf16.msra.mxu0 %v289
    %303 = vmatpush.bf16.msra.mxu0 %v288
    %304 = vmatpush.bf16.msra.mxu0 %v287
    %305 = vmatpush.bf16.msra.mxu0 %v286
    %306 = vmatpush.bf16.msra.mxu0 %v285
    %307 = vmatpush.bf16.msra.mxu0 %v284
    %308 = vmatmul.bf16.gmra.mxu0 %v231
    %v309 = vpop.f32.mrf.mxu0
    %v310 = vadd.f32 %v250, %v309
    %v311 = vpop.f32.mrf.mxu0
    %v312 = vadd.f32 %v250, %v311
    %313 = vdwg.mxu0
    %314 = vst [vmem:[#allocation10] sm:$0xff] %v310
    %315 = vst [vmem:[#allocation10 + $0x8] sm:$0xff] %v312
    // Predicated region
    $region46: #{tpu_custom_call.1} parent=1 // pred_check
      _
    $region47: #{tpu_custom_call.1} parent=1 // pred_check_branch
      %317 = sbr.rel (0) target = $region49
    $region48: #{tpu_custom_call.1} parent=1 // pred_region
      %319 = vsyncadd [#allocation4], 0
      %s320 = sshll.u32 [#allocation10], 4
      %s321 = int_to_ptr.vmem [resolvable:$true] %s320
      %s322 = sshll.u32 %s7, 4
      %s323 = int_to_ptr.hbm [resolvable:$true] %s322
      %328 = dma.vmem_to_hbm [thread:$0]  %s321, 256, %s323, [#allocation4], 128, 128, 8
    $region49: #{tpu_custom_call.1} parent=1 // pred_fallthru
      _
    // Predicated region
    $region50: #{tpu_custom_call.1} parent=1 // pred_check
      _
    $region51: #{tpu_custom_call.1} parent=1 // pred_check_branch
      %330 = sbr.rel (0) target = $region53
    $region52: #{tpu_custom_call.1} parent=1 // pred_region
      %332 = dma.done [#allocation4], 256
    $region53: #{tpu_custom_call.1} parent=1 // pred_fallthru
      _
    %333 = vsyncpa [#allocation3], 1
    %334 = vsyncpa [#allocation6], 1
    %335 = vsyncpa [#allocation9], 1
    %336 = vsyncpa [#allocation4], 1

</llo_original>
